<compile_context>
chip_gen: v7x
topology: tpu7x:2x2x1
jax: 0.10.0
libtpu: 0.0.40
codegen_flags: <defaults>
</compile_context>

<pallas_src>
import functools

import jax
import jax.numpy as jnp
from jax import lax
from jax.experimental import pallas as pl
from jax.experimental.pallas import tpu as pltpu

_LANE = 128
_SUBLANE = 8


def _round_up(x, m):
    return ((x + m - 1) // m) * m


def _pick_row_block(rows):
    """Rows per block: a multiple of 8 that divides `rows` (>=2 blocks when possible so the
    row axis can use both v7x TensorCores), else the full extent (sublane-padded in HW)."""
    if rows % _SUBLANE != 0:
        return rows
    for rb in (32, 24, 16, 8):
        if rows % rb == 0 and rows // rb >= 2:
            return rb
    return rows  # rows == 8


def _pick_tiles(rows, hw, in_pair_bytes,
                target_step_bytes=2 << 20, tile_budget_bytes=12 << 20):
    """Choose (row_block, tn): ~target_step_bytes of input per grid step, bounded by a VMEM
    tile budget (double-buffered inputs + 4 f32 accumulators)."""
    row_block = _pick_row_block(rows)
    if hw <= _LANE:
        return row_block, hw
    per_lane_in = row_block * in_pair_bytes                                  # both inputs, 1 buffer
    per_lane_vmem = 2 * per_lane_in + 4 * _round_up(row_block, _SUBLANE) * 4
    tn = min(target_step_bytes // per_lane_in,
             tile_budget_bytes // per_lane_vmem,
             hw)
    tn = max(_LANE, (tn // _LANE) * _LANE)
    return row_block, tn


def _bce_dice_stats_kernel(x_ref, t_ref, out_ref,
                           acc_pt, acc_pp, acc_tt, acc_bce, *, hw, tn):
    j = pl.program_id(1)
    nj = pl.num_programs(1)

    @pl.when(j == 0)
    def _init():
        acc_pt[...] = jnp.zeros_like(acc_pt)
        acc_pp[...] = jnp.zeros_like(acc_pp)
        acc_tt[...] = jnp.zeros_like(acc_tt)
        acc_bce[...] = jnp.zeros_like(acc_bce)

    def _accumulate(mask_tail):
        x = x_ref[...].astype(jnp.float32)            # (row_block, tn)
        t = t_ref[...].astype(jnp.float32)
        # sigmoid via tanh: single EUP op, no divide / Newton refinement / selects.
        p = 0.5 * jnp.tanh(0.5 * x) + 0.5
        # Numerically stable BCE-with-logits (log1p matches the reference exactly).
        bce = jnp.maximum(x, 0.0) - x * t + jnp.log1p(jnp.exp(-jnp.abs(x)))
        pt = p * t
        pp = p * p
        tt = t * t  # (if targets were guaranteed binary, tt == t would drop one acc stream)
        if mask_tail:
            # Select (not multiply-by-mask) so garbage/NaN in the out-of-bounds lane tail
            # of the partial block cannot propagate into the sums.
            lane = j * tn + lax.broadcasted_iota(jnp.int32, (1, tn), 1)
            valid = lane < hw                          # (1, tn), broadcasts over rows
            pt = jnp.where(valid, pt, 0.0)
            pp = jnp.where(valid, pp, 0.0)
            tt = jnp.where(valid, tt, 0.0)
            bce = jnp.where(valid, bce, 0.0)
        acc_pt[...] += pt
        acc_pp[...] += pp
        acc_tt[...] += tt
        acc_bce[...] += bce

    if hw % tn != 0:
        # Pay the ragged-tail mask only on the last lane block, not every grid step.
        @pl.when(j < nj - 1)
        def _interior():
            _accumulate(False)

        @pl.when(j == nj - 1)
        def _tail():
            _accumulate(True)
    else:
        _accumulate(False)

    @pl.when(j == nj - 1)
    def _finalize():
        out_ref[...] = jnp.concatenate(
            [jnp.sum(acc_pt[...], axis=-1, keepdims=True),
             jnp.sum(acc_pp[...], axis=-1, keepdims=True),
             jnp.sum(acc_tt[...], axis=-1, keepdims=True),
             jnp.sum(acc_bce[...], axis=-1, keepdims=True)],
            axis=-1)                                    # (row_block, 4) written once


def bce_dice_loss(logits_nchw, target_nchw, *, alpha=1.0, beta=1.0, epsilon=1e-6):
    """Forward of BCEDiceLoss. logits/target: (N, C, H, W), target in [0, 1]."""
    assert logits_nchw.shape == target_nchw.shape
    N, C, H, W = logits_nchw.shape
    HW = H * W
    R = N * C

    # Free reshapes only (NCHW is contiguous): no HBM transpose, no padding copy.
    x = logits_nchw.reshape(R, HW)
    t = target_nchw.reshape(R, HW)

    in_pair_bytes = x.dtype.itemsize + t.dtype.itemsize
    row_block, tn = _pick_tiles(R, HW, in_pair_bytes)
    ni = R // row_block
    nj = pl.cdiv(HW, tn)

    # Explicit VMEM budget: double-buffered input tiles + 4 f32 accumulators + output block.
    rb_pad = _round_up(row_block, _SUBLANE)
    footprint = (2 * row_block * tn * in_pair_bytes
                 + 4 * rb_pad * tn * 4
                 + 2 * rb_pad * _LANE * 4)
    vmem_limit = int(min(64 << 20, max(32 << 20, 2 * footprint)))

    kernel = functools.partial(_bce_dice_stats_kernel, hw=HW, tn=tn)

    stats = pl.pallas_call(
        kernel,
        out_shape=jax.ShapeDtypeStruct((R, 4), jnp.float32),  # [p*t, p*p, t*t, bce] per row
        grid_spec=pltpu.PrefetchScalarGridSpec(
            num_scalar_prefetch=0,
            grid=(ni, nj),
            in_specs=[
                pl.BlockSpec((row_block, tn), lambda i, j: (i, j)),
                pl.BlockSpec((row_block, tn), lambda i, j: (i, j)),
            ],
            out_specs=pl.BlockSpec((row_block, 4), lambda i, j: (i, 0)),
            scratch_shapes=[pltpu.VMEM((row_block, tn), jnp.float32)] * 4,
        ),
        compiler_params=pltpu.CompilerParams(
            dimension_semantics=("parallel", "arbitrary"),
            vmem_limit_bytes=vmem_limit,
        ),
    )(x, t)

    # Tiny per-channel assembly in plain JAX: fold the per-(n,c) partials over N.
    per_chan = jnp.sum(stats.reshape(N, C, 4), axis=0)          # (C, 4)
    intersect = per_chan[:, 0]
    denom = per_chan[:, 1] + per_chan[:, 2]
    per_channel_dice = 2.0 * intersect / jnp.maximum(denom, epsilon)
    dice_loss = 1.0 - jnp.mean(per_channel_dice)
    bce = jnp.sum(per_chan[:, 3]) / jnp.float32(N * C * HW)
    return alpha * bce + beta * dice_loss


def _reference_loss(logits, target, alpha=1.0, beta=1.0, epsilon=1e-6):
    """Pure-JAX reference mirroring the PyTorch BCEDiceLoss module."""
    x = logits.astype(jnp.float32)
    t = target.astype(jnp.float32)
    bce = jnp.mean(jnp.maximum(x, 0.0) - x * t + jnp.log1p(jnp.exp(-jnp.abs(x))))
    C = x.shape[1]
    p = jax.nn.sigmoid(x)
    pf = jnp.transpose(p, (1, 0, 2, 3)).reshape(C, -1)
    tf = jnp.transpose(t, (1, 0, 2, 3)).reshape(C, -1)
    inter = jnp.sum(pf * tf, axis=-1)
    denom = jnp.sum(pf * pf, axis=-1) + jnp.sum(tf * tf, axis=-1)
    dice = 2.0 * inter / jnp.maximum(denom, epsilon)
    return alpha * bce + beta * (1.0 - jnp.mean(dice))


if __name__ == "__main__":
    key = jax.random.PRNGKey(0)
    k1, k2, k3, k4 = jax.random.split(key, 4)

    # Case 1: spec shapes (N=2, C=4, 16x16) — N*C = 8 packs the sublanes exactly.
    logits = jax.random.normal(k1, (2, 4, 16, 16), dtype=jnp.float32)
    target = jax.random.bernoulli(k2, 0.5, (2, 4, 16, 16)).astype(jnp.float32)
    loss = jax.block_until_ready(bce_dice_loss(logits, target, alpha=1.0, beta=1.0))
    ref = _reference_loss(logits, target, alpha=1.0, beta=1.0)
    assert jnp.allclose(loss, ref, rtol=1e-5, atol=1e-5), (loss, ref)

    # Case 2: odd spatial extent + N*C not a multiple of 8 + soft (non-binary) targets —
    # exercises the masked ragged lane tail and the full-extent row fallback.
    logits2 = jax.random.normal(k3, (2, 3, 18, 18), dtype=jnp.float32)
    target2 = jax.random.uniform(k4, (2, 3, 18, 18), dtype=jnp.float32)
    loss2 = jax.block_until_ready(bce_dice_loss(logits2, target2, alpha=0.7, beta=1.3))
    ref2 = _reference_loss(logits2, target2, alpha=0.7, beta=1.3)
    assert jnp.allclose(loss2, ref2, rtol=1e-5, atol=1e-5), (loss2, ref2)

    print("KERNEL_OK")
</pallas_src>

<mosaic_0001>
module attributes {stable_mosaic.version = 11 : i64} {
  func.func @_bce_dice_stats_kernel(%arg0: i32, %arg1: i32, %arg2: memref<8x256xf32, #tpu.memory_space<vmem>>, %arg3: memref<8x256xf32, #tpu.memory_space<vmem>>, %arg4: memref<8x4xf32, #tpu.memory_space<vmem>>, %arg5: memref<8x256xf32, #tpu.memory_space<vmem>>, %arg6: memref<8x256xf32, #tpu.memory_space<vmem>>, %arg7: memref<8x256xf32, #tpu.memory_space<vmem>>, %arg8: memref<8x256xf32, #tpu.memory_space<vmem>>) attributes {dimension_semantics = [#tpu.dimension_semantics<parallel>, #tpu.dimension_semantics<arbitrary>], iteration_bounds = array<i64: 1, 1>, scalar_prefetch = 0 : i64, scratch_operands = 4 : i64, tpu.core_type = #tpu.core_type<tc>, window_params = [{transform_indices = @transform_0, window_bounds = array<i64: 8, 256>}, {transform_indices = @transform_1, window_bounds = array<i64: 8, 256>}, {transform_indices = @transform_2, window_bounds = array<i64: 8, 4>}]} {
    %c0_i32 = arith.constant 0 : i32
    %0 = arith.cmpi eq, %arg1, %c0_i32 : i32
    %1 = arith.extui %0 : i1 to i32
    %c0_i32_0 = arith.constant 0 : i32
    %2 = arith.cmpi ne, %1, %c0_i32_0 : i32
    scf.if %2 {
      %cst_26 = arith.constant 0.000000e+00 : f32
      %40 = vector.broadcast %cst_26 : f32 to vector<8x256xf32>
      %c0_27 = arith.constant 0 : index
      %c0_28 = arith.constant 0 : index
      %41 = vector.load %arg5[%c0_27, %c0_28] : memref<8x256xf32, #tpu.memory_space<vmem>>, vector<8x256xf32>
      tpu.vector_store %arg5[%c0_27, %c0_28], %40 {strides = array<i32>} : memref<8x256xf32, #tpu.memory_space<vmem>>, vector<8x256xf32>,
      %cst_29 = arith.constant 0.000000e+00 : f32
      %42 = vector.broadcast %cst_29 : f32 to vector<8x256xf32>
      %c0_30 = arith.constant 0 : index
      %c0_31 = arith.constant 0 : index
      %43 = vector.load %arg6[%c0_30, %c0_31] : memref<8x256xf32, #tpu.memory_space<vmem>>, vector<8x256xf32>
      tpu.vector_store %arg6[%c0_30, %c0_31], %42 {strides = array<i32>} : memref<8x256xf32, #tpu.memory_space<vmem>>, vector<8x256xf32>,
      %cst_32 = arith.constant 0.000000e+00 : f32
      %44 = vector.broadcast %cst_32 : f32 to vector<8x256xf32>
      %c0_33 = arith.constant 0 : index
      %c0_34 = arith.constant 0 : index
      %45 = vector.load %arg7[%c0_33, %c0_34] : memref<8x256xf32, #tpu.memory_space<vmem>>, vector<8x256xf32>
      tpu.vector_store %arg7[%c0_33, %c0_34], %44 {strides = array<i32>} : memref<8x256xf32, #tpu.memory_space<vmem>>, vector<8x256xf32>,
      %cst_35 = arith.constant 0.000000e+00 : f32
      %46 = vector.broadcast %cst_35 : f32 to vector<8x256xf32>
      %c0_36 = arith.constant 0 : index
      %c0_37 = arith.constant 0 : index
      %47 = vector.load %arg8[%c0_36, %c0_37] : memref<8x256xf32, #tpu.memory_space<vmem>>, vector<8x256xf32>
      tpu.vector_store %arg8[%c0_36, %c0_37], %46 {strides = array<i32>} : memref<8x256xf32, #tpu.memory_space<vmem>>, vector<8x256xf32>,
    } else {
    }
    %c0 = arith.constant 0 : index
    %c0_1 = arith.constant 0 : index
    %3 = vector.load %arg2[%c0, %c0_1] : memref<8x256xf32, #tpu.memory_space<vmem>>, vector<8x256xf32>
    %c0_2 = arith.constant 0 : index
    %c0_3 = arith.constant 0 : index
    %4 = vector.load %arg3[%c0_2, %c0_3] : memref<8x256xf32, #tpu.memory_space<vmem>>, vector<8x256xf32>
    %cst = arith.constant 5.000000e-01 : f32
    %5 = vector.broadcast %cst : f32 to vector<8x256xf32>
    %6 = arith.mulf %5, %3 : vector<8x256xf32>
    %7 = math.tanh %6 : vector<8x256xf32>
    %cst_4 = arith.constant 5.000000e-01 : f32
    %8 = vector.broadcast %cst_4 : f32 to vector<8x256xf32>
    %9 = arith.mulf %8, %7 : vector<8x256xf32>
    %cst_5 = arith.constant 5.000000e-01 : f32
    %10 = vector.broadcast %cst_5 : f32 to vector<8x256xf32>
    %11 = arith.addf %9, %10 : vector<8x256xf32>
    %cst_6 = arith.constant 0.000000e+00 : f32
    %12 = vector.broadcast %cst_6 : f32 to vector<8x256xf32>
    %13 = arith.maximumf %3, %12 : vector<8x256xf32>
    %14 = arith.mulf %3, %4 : vector<8x256xf32>
    %15 = arith.subf %13, %14 : vector<8x256xf32>
    %16 = math.absf %3 : vector<8x256xf32>
    %cst_7 = arith.constant 0.000000e+00 : f32
    %17 = vector.broadcast %cst_7 : f32 to vector<8x256xf32>
    %18 = arith.subf %17, %16 : vector<8x256xf32>
    %19 = math.exp %18 : vector<8x256xf32>
    %20 = math.log1p %19 : vector<8x256xf32>
    %21 = arith.addf %15, %20 : vector<8x256xf32>
    %22 = arith.mulf %11, %4 : vector<8x256xf32>
    %23 = arith.mulf %11, %11 : vector<8x256xf32>
    %24 = arith.mulf %4, %4 : vector<8x256xf32>
    %c0_8 = arith.constant 0 : index
    %c0_9 = arith.constant 0 : index
    %25 = vector.load %arg5[%c0_8, %c0_9] : memref<8x256xf32, #tpu.memory_space<vmem>>, vector<8x256xf32>
    %26 = arith.addf %25, %22 : vector<8x256xf32>
    %c0_10 = arith.constant 0 : index
    %c0_11 = arith.constant 0 : index
    %27 = vector.load %arg5[%c0_10, %c0_11] : memref<8x256xf32, #tpu.memory_space<vmem>>, vector<8x256xf32>
    tpu.vector_store %arg5[%c0_10, %c0_11], %26 {strides = array<i32>} : memref<8x256xf32, #tpu.memory_space<vmem>>, vector<8x256xf32>,
    %c0_12 = arith.constant 0 : index
    %c0_13 = arith.constant 0 : index
    %28 = vector.load %arg6[%c0_12, %c0_13] : memref<8x256xf32, #tpu.memory_space<vmem>>, vector<8x256xf32>
    %29 = arith.addf %28, %23 : vector<8x256xf32>
    %c0_14 = arith.constant 0 : index
    %c0_15 = arith.constant 0 : index
    %30 = vector.load %arg6[%c0_14, %c0_15] : memref<8x256xf32, #tpu.memory_space<vmem>>, vector<8x256xf32>
    tpu.vector_store %arg6[%c0_14, %c0_15], %29 {strides = array<i32>} : memref<8x256xf32, #tpu.memory_space<vmem>>, vector<8x256xf32>,
    %c0_16 = arith.constant 0 : index
    %c0_17 = arith.constant 0 : index
    %31 = vector.load %arg7[%c0_16, %c0_17] : memref<8x256xf32, #tpu.memory_space<vmem>>, vector<8x256xf32>
    %32 = arith.addf %31, %24 : vector<8x256xf32>
    %c0_18 = arith.constant 0 : index
    %c0_19 = arith.constant 0 : index
    %33 = vector.load %arg7[%c0_18, %c0_19] : memref<8x256xf32, #tpu.memory_space<vmem>>, vector<8x256xf32>
    tpu.vector_store %arg7[%c0_18, %c0_19], %32 {strides = array<i32>} : memref<8x256xf32, #tpu.memory_space<vmem>>, vector<8x256xf32>,
    %c0_20 = arith.constant 0 : index
    %c0_21 = arith.constant 0 : index
    %34 = vector.load %arg8[%c0_20, %c0_21] : memref<8x256xf32, #tpu.memory_space<vmem>>, vector<8x256xf32>
    %35 = arith.addf %34, %21 : vector<8x256xf32>
    %c0_22 = arith.constant 0 : index
    %c0_23 = arith.constant 0 : index
    %36 = vector.load %arg8[%c0_22, %c0_23] : memref<8x256xf32, #tpu.memory_space<vmem>>, vector<8x256xf32>
    tpu.vector_store %arg8[%c0_22, %c0_23], %35 {strides = array<i32>} : memref<8x256xf32, #tpu.memory_space<vmem>>, vector<8x256xf32>,
    %c0_i32_24 = arith.constant 0 : i32
    %37 = arith.cmpi eq, %arg1, %c0_i32_24 : i32
    %38 = arith.extui %37 : i1 to i32
    %c0_i32_25 = arith.constant 0 : i32
    %39 = arith.cmpi ne, %38, %c0_i32_25 : i32
    scf.if %39 {
      %c0_26 = arith.constant 0 : index
      %c0_27 = arith.constant 0 : index
      %40 = vector.load %arg5[%c0_26, %c0_27] : memref<8x256xf32, #tpu.memory_space<vmem>>, vector<8x256xf32>
      %cst_28 = arith.constant dense<0.000000e+00> : vector<8xf32>
      %41 = vector.multi_reduction <add>, %40, %cst_28 [1] : vector<8x256xf32> to vector<8xf32>
      %42 = vector.shape_cast %41 : vector<8xf32> to vector<8x1xf32>
      %c0_29 = arith.constant 0 : index
      %c0_30 = arith.constant 0 : index
      %43 = vector.load %arg6[%c0_29, %c0_30] : memref<8x256xf32, #tpu.memory_space<vmem>>, vector<8x256xf32>
      %cst_31 = arith.constant dense<0.000000e+00> : vector<8xf32>
      %44 = vector.multi_reduction <add>, %43, %cst_31 [1] : vector<8x256xf32> to vector<8xf32>
      %45 = vector.shape_cast %44 : vector<8xf32> to vector<8x1xf32>
      %c0_32 = arith.constant 0 : index
      %c0_33 = arith.constant 0 : index
      %46 = vector.load %arg7[%c0_32, %c0_33] : memref<8x256xf32, #tpu.memory_space<vmem>>, vector<8x256xf32>
      %cst_34 = arith.constant dense<0.000000e+00> : vector<8xf32>
      %47 = vector.multi_reduction <add>, %46, %cst_34 [1] : vector<8x256xf32> to vector<8xf32>
      %48 = vector.shape_cast %47 : vector<8xf32> to vector<8x1xf32>
      %c0_35 = arith.constant 0 : index
      %c0_36 = arith.constant 0 : index
      %49 = vector.load %arg8[%c0_35, %c0_36] : memref<8x256xf32, #tpu.memory_space<vmem>>, vector<8x256xf32>
      %cst_37 = arith.constant dense<0.000000e+00> : vector<8xf32>
      %50 = vector.multi_reduction <add>, %49, %cst_37 [1] : vector<8x256xf32> to vector<8xf32>
      %51 = vector.shape_cast %50 : vector<8xf32> to vector<8x1xf32>
      %52 = tpu.concatenate %42, %45, %48, %51 in 1 : vector<8x1xf32>, vector<8x1xf32>, vector<8x1xf32>, vector<8x1xf32> -> vector<8x4xf32>
      %c0_38 = arith.constant 0 : index
      %c0_39 = arith.constant 0 : index
      %53 = vector.load %arg4[%c0_38, %c0_39] : memref<8x4xf32, #tpu.memory_space<vmem>>, vector<8x4xf32>
      tpu.vector_store %arg4[%c0_38, %c0_39], %52 {strides = array<i32>} : memref<8x4xf32, #tpu.memory_space<vmem>>, vector<8x4xf32>,
    } else {
    }
    return
  }
  func.func @transform_0(%arg0: i32, %arg1: i32) -> (i32, i32) {
    %c0_i32 = arith.constant 0 : i32
    return %arg0, %arg1 : i32, i32
  }
  func.func @transform_1(%arg0: i32, %arg1: i32) -> (i32, i32) {
    %c0_i32 = arith.constant 0 : i32
    return %arg0, %arg1 : i32, i32
  }
  func.func @transform_2(%arg0: i32, %arg1: i32) -> (i32, i32) {
    %c0_i32 = arith.constant 0 : i32
    %c0_i32_0 = arith.constant 0 : i32
    return %arg0, %c0_i32 : i32, i32
  }
}

</mosaic_0001>

<llo_original>
// kernel: tpu_custom_call.1
$region0: #{tpu_custom_call.1}
  #allocation0 [shape = 'u32[]', space=smem, size = 0x4, offset = 0x4, fixed_abs, tag = 'smem constant byte address 0x4 - core index']
  #allocation1 [shape = 'u32[144,128]{1,0:T(1,128)}', space=vmem, size = 0x12000, scoped, tag = 'internal scratch']
  #allocation2 [shape = 'f32[8,256]{1,0:T(8,128)}', space=vmem, size = 0x2000, scoped, tag = 'scratch operand']
  #allocation3 [shape = 'f32[8,256]{1,0:T(8,128)}', space=vmem, size = 0x2000, scoped, tag = 'scratch operand']
  #allocation4 [shape = 'f32[8,256]{1,0:T(8,128)}', space=vmem, size = 0x2000, scoped, tag = 'scratch operand']
  #allocation5 [shape = 'f32[8,256]{1,0:T(8,128)}', space=vmem, size = 0x2000, scoped, tag = 'scratch operand']
  %s0 = inlined_call_operand.hbm [shape: f32[8,256], index: 0, kind: input, shape index: {}]
  %s1 = inlined_call_operand.hbm [shape: f32[8,256], index: 1, kind: input, shape index: {}]
  %s2 = inlined_call_operand.vmem [shape: f32[8,4], index: 2, kind: output, shape index: {}]
  %s3 = sld [smem:[#allocation0]]
  $region34: #{tpu_custom_call.1} parent=0
    _
  %s5 = ssub.s32 1, %s3
  %s6 = scalar_select 0, %s5, %s3
  $region1: #{tpu_custom_call.1} parent=0
    #allocation6 [shape = 'u8[8192]{0}', space=vmem, size = 0x2000, scoped, tag = 'input window, operand 0, single buffered']
    #allocation7 [shape = 's32[1]{0}', space=sflag, size = 0x4, scoped, tag = 'scoped memory for tpu_custom_call.1']
    #allocation8 [shape = 'u8[8192]{0}', space=vmem, size = 0x2000, scoped, tag = 'input window, operand 1, single buffered']
    #allocation9 [shape = 's32[1]{0}', space=sflag, size = 0x4, scoped, tag = 'scoped memory for tpu_custom_call.1']
    %7 = vsyncpa [#allocation7], 0
    %8 = vsyncpa [#allocation9], 0
    // Predicated region
    $region2: #{tpu_custom_call.1} parent=1 // pred_check
      _
    $region3: #{tpu_custom_call.1} parent=1 // pred_check_branch
      %10 = sbr.rel (0) target = $region5
    $region4: #{tpu_custom_call.1} parent=1 // pred_region
      %s12 = ssub.s32 256, 256
      %13 = vsyncadd [#allocation7], %s12
      %s15 = sshll.u32 [#allocation6], 4
      %s16 = int_to_ptr.vmem [resolvable:$true] %s15
      %18 = dma.hbm_to_vmem [thread:$0]  %s0, 256, %s16, [#allocation7]
    $region5: #{tpu_custom_call.1} parent=1 // pred_fallthru
      _
    // Predicated region
    $region6: #{tpu_custom_call.1} parent=1 // pred_check
      _
    $region7: #{tpu_custom_call.1} parent=1 // pred_check_branch
      %20 = sbr.rel (0) target = $region9
    $region8: #{tpu_custom_call.1} parent=1 // pred_region
      %s22 = ssub.s32 256, 256
      %23 = vsyncadd [#allocation9], %s22
      %s25 = sshll.u32 [#allocation8], 4
      %s26 = int_to_ptr.vmem [resolvable:$true] %s25
      %28 = dma.hbm_to_vmem [thread:$0]  %s1, 256, %s26, [#allocation9]
    $region9: #{tpu_custom_call.1} parent=1 // pred_fallthru
      _
    // Predicated region
    $region10: #{tpu_custom_call.1} parent=1 // pred_check
      _
    $region11: #{tpu_custom_call.1} parent=1 // pred_check_branch
      %30 = sbr.rel (0) target = $region13
    $region12: #{tpu_custom_call.1} parent=1 // pred_region
      %31 = dma.done [#allocation7], 256
    $region13: #{tpu_custom_call.1} parent=1 // pred_fallthru
      _
    // Predicated region
    $region14: #{tpu_custom_call.1} parent=1 // pred_check
      _
    $region15: #{tpu_custom_call.1} parent=1 // pred_check_branch
      %33 = sbr.rel (0) target = $region17
    $region16: #{tpu_custom_call.1} parent=1 // pred_region
      %34 = dma.done [#allocation9], 256
    $region17: #{tpu_custom_call.1} parent=1 // pred_fallthru
      _
    %p35 = scmp.eq.s32.totalorder 0, 0
    // Predicated region
    $region18: #{tpu_custom_call.1} parent=1 // pred_check
      %p36 = pneg %p35
    $region19: #{tpu_custom_call.1} parent=1 // pred_check_branch
      %38 = sbr.rel (%p36) target = $region21
    $region20: #{tpu_custom_call.1} parent=1 // pred_region
      %39 = vst [vmem:[#allocation2] sm:$0xff] 0.0
      %40 = vst [vmem:[#allocation2 + $0x8] sm:$0xff] 0.0
      %41 = vst [vmem:[#allocation3] sm:$0xff] 0.0
      %42 = vst [vmem:[#allocation3 + $0x8] sm:$0xff] 0.0
      %43 = vst [vmem:[#allocation4] sm:$0xff] 0.0
      %44 = vst [vmem:[#allocation4 + $0x8] sm:$0xff] 0.0
      %45 = vst [vmem:[#allocation5] sm:$0xff] 0.0
      %46 = vst [vmem:[#allocation5 + $0x8] sm:$0xff] 0.0
    $region21: #{tpu_custom_call.1} parent=1 // pred_fallthru
      _
    %v47 = vld [vmem:[#allocation6] sm:$0xff]
    %v48 = vld [vmem:[#allocation6 + $0x8] sm:$0xff]
    %v49 = vld [vmem:[#allocation8] sm:$0xff]
    %v50 = vld [vmem:[#allocation8 + $0x8] sm:$0xff]
    %v51 = vmul.f32 %v47, 0.5
    %v52 = vmul.f32 %v48, 0.5
    %v53 = vtanh.pop %v51
    %v54 = vtanh.pop %v52
    %v55 = vmul.f32 %v53, 0.5
    %v56 = vmul.f32 %v54, 0.5
    %v57 = vadd.f32 %v55, 0.5
    %v58 = vadd.f32 %v56, 0.5
    %v59 = vmax.f32 %v47, 0.0
    %v60 = vmax.f32 %v48, 0.0
    %v61 = vmul.f32 %v47, %v49
    %v62 = vmul.f32 %v48, %v50
    %v63 = vsub.f32 %v59, %v61
    %v64 = vsub.f32 %v60, %v62
    %v65 = vand.u32 2147483647, %v47
    %v66 = vand.u32 2147483647, %v48
    %v67 = vsub.f32 0.0, %v65
    %v68 = vsub.f32 0.0, %v66
    %v69 = vmul.f32 %v67, 1.442695
    %v70 = vpow.pop %v69
    %v71 = vmul.f32 %v68, 1.442695
    %v72 = vpow.pop %v71
    %v73 = vadd.f32 %v70, 1.0
    %v74 = vlog2.pop %v73
    %v75 = vmul.f32 %v74, 0.6931472
    %v76 = vmul.f32 -0.5, %v70
    %v77 = vadd.f32 %v76, 1.0
    %v78 = vmul.f32 %v77, %v70
    %v79 = vand.u32 2147483647, %v70
    %vm80 = vcmp.lt.f32.partialorder %v79, 0.0004427343
    %v81 = vsel %vm80, %v78, %v75
    %v82 = vadd.f32 %v72, 1.0
    %v83 = vlog2.pop %v82
    %v84 = vmul.f32 %v83, 0.6931472
    %v85 = vmul.f32 -0.5, %v72
    %v86 = vadd.f32 %v85, 1.0
    %v87 = vmul.f32 %v86, %v72
    %v88 = vand.u32 2147483647, %v72
    %vm89 = vcmp.lt.f32.partialorder %v88, 0.0004427343
    %v90 = vsel %vm89, %v87, %v84
    %v91 = vadd.f32 %v63, %v81
    %v92 = vadd.f32 %v64, %v90
    %v93 = vmul.f32 %v57, %v49
    %v94 = vmul.f32 %v58, %v50
    %v95 = vmul.f32 %v57, %v57
    %v96 = vmul.f32 %v58, %v58
    %v97 = vmul.f32 %v49, %v49
    %v98 = vmul.f32 %v50, %v50
    %v99 = vld [vmem:[#allocation2] sm:$0xff]
    %v100 = vld [vmem:[#allocation2 + $0x8] sm:$0xff]
    %v101 = vadd.f32 %v99, %v93
    %v102 = vadd.f32 %v100, %v94
    %103 = vst [vmem:[#allocation2] sm:$0xff] %v101
    %104 = vst [vmem:[#allocation2 + $0x8] sm:$0xff] %v102
    %v105 = vld [vmem:[#allocation3] sm:$0xff]
    %v106 = vld [vmem:[#allocation3 + $0x8] sm:$0xff]
    %v107 = vadd.f32 %v105, %v95
    %v108 = vadd.f32 %v106, %v96
    %109 = vst [vmem:[#allocation3] sm:$0xff] %v107
    %110 = vst [vmem:[#allocation3 + $0x8] sm:$0xff] %v108
    %v111 = vld [vmem:[#allocation4] sm:$0xff]
    %v112 = vld [vmem:[#allocation4 + $0x8] sm:$0xff]
    %v113 = vadd.f32 %v111, %v97
    %v114 = vadd.f32 %v112, %v98
    %115 = vst [vmem:[#allocation4] sm:$0xff] %v113
    %116 = vst [vmem:[#allocation4 + $0x8] sm:$0xff] %v114
    %v117 = vld [vmem:[#allocation5] sm:$0xff]
    %v118 = vld [vmem:[#allocation5 + $0x8] sm:$0xff]
    %v119 = vadd.f32 %v117, %v91
    %v120 = vadd.f32 %v118, %v92
    %121 = vst [vmem:[#allocation5] sm:$0xff] %v119
    %122 = vst [vmem:[#allocation5 + $0x8] sm:$0xff] %v120
    // Predicated region
    $region22: #{tpu_custom_call.1} parent=1 // pred_check
      %p123 = pneg %p35
    $region23: #{tpu_custom_call.1} parent=1 // pred_check_branch
      %125 = sbr.rel (%p123) target = $region25
    $region24: #{tpu_custom_call.1} parent=1 // pred_region
      %v126 = vld [vmem:[#allocation2] sm:$0xff]
      %v127 = vld [vmem:[#allocation2 + $0x8] sm:$0xff]
      %v128 = vadd.f32 %v126, %v127
      %129 = vadd.xlane.f32.xlu0 %v128
      %v130 = vpop.xlane.xlu0 %129
      %v131 = vld [vmem:[#allocation3] sm:$0xff]
      %v132 = vld [vmem:[#allocation3 + $0x8] sm:$0xff]
      %v133 = vadd.f32 %v131, %v132
      %134 = vadd.xlane.f32.xlu0 %v133
      %v135 = vpop.xlane.xlu0 %134
      %v136 = vld [vmem:[#allocation4] sm:$0xff]
      %v137 = vld [vmem:[#allocation4 + $0x8] sm:$0xff]
      %v138 = vadd.f32 %v136, %v137
      %139 = vadd.xlane.f32.xlu0 %v138
      %v140 = vpop.xlane.xlu0 %139
      %v141 = vld [vmem:[#allocation5] sm:$0xff]
      %v142 = vld [vmem:[#allocation5 + $0x8] sm:$0xff]
      %v143 = vadd.f32 %v141, %v142
      %144 = vadd.xlane.f32.xlu0 %v143
      %v145 = vpop.xlane.xlu0 %144
      %vm146 = vcmask 7168
      %v147 = vsel %vm146, %v130, %v135
      %vm148 = vcmask 15360
      %v149 = vsel %vm148, %v147, %v140
      %vm150 = vcmask 23552
      %v151 = vsel %vm150, %v149, %v145
      %vm152 = vcmask 31744
      %153 = vst.msk [vmem:[%s2] sm:$0xff] %vm152, %v151
    $region25: #{tpu_custom_call.1} parent=1 // pred_fallthru
      _
    // Predicated region
    $region26: #{tpu_custom_call.1} parent=1 // pred_check
      _
    $region27: #{tpu_custom_call.1} parent=1 // pred_check_branch
      %155 = sbr.rel (0) target = $region29
    $region28: #{tpu_custom_call.1} parent=1 // pred_region
      _
    $region29: #{tpu_custom_call.1} parent=1 // pred_fallthru
      _
    // Predicated region
    $region30: #{tpu_custom_call.1} parent=1 // pred_check
      _
    $region31: #{tpu_custom_call.1} parent=1 // pred_check_branch
      %157 = sbr.rel (0) target = $region33
    $region32: #{tpu_custom_call.1} parent=1 // pred_region
      _
    $region33: #{tpu_custom_call.1} parent=1 // pred_fallthru
      _
    %158 = vsyncpa [#allocation7], 1
    %159 = vsyncpa [#allocation9], 1

</llo_original>
